<compile_context>
chip_gen: v7x
topology: tpu7x:2x2x1
jax: 0.10.0
libtpu: 0.0.40
codegen_flags: <defaults>
</compile_context>

<pallas_src>
import functools

import jax
import jax.numpy as jnp
from jax.experimental import pallas as pl
from jax.experimental.pallas import tpu as pltpu


def _adain_kernel(x_ref, s_ref, wg_ref, wb_ref, o_ref, *, eps, c_tile):
    # x_ref : (c_tile, HW)   activation tile of one sample (channels on sublanes,
    #                        spatial on the 128-lane axis -> lane-dense stores)
    # s_ref : (1, Saug)      style row of that sample (f32, ones column appended)
    # wg/wb : (C, Saug)      grid-resident FC weight halves, bias folded in (f32)
    c0 = pl.multiple_of(pl.program_id(1) * c_tile, c_tile)

    # Style FC on the VPU: per-channel gamma/beta = sum(w_row * s_aug).
    s = s_ref[...]                                                    # (1, Saug)
    gamma = jnp.sum(wg_ref[pl.ds(c0, c_tile), :] * s, axis=-1, keepdims=True)
    beta = jnp.sum(wb_ref[pl.ds(c0, c_tile), :] * s, axis=-1, keepdims=True)

    # Instance-norm statistics over the spatial (lane) axis; biased variance,
    # eps inside the rsqrt -> matches torch InstanceNorm2d(affine=False).
    x = x_ref[...].astype(jnp.float32)
    mean = jnp.mean(x, axis=-1, keepdims=True)
    d = x - mean
    var = jnp.mean(d * d, axis=-1, keepdims=True)
    inv = jax.lax.rsqrt(var + eps)

    o_ref[...] = ((1.0 + gamma) * (d * inv) + beta).astype(o_ref.dtype)


def _vmem_limit_bytes():
    """3/4 of physical VMEM, capped at 96 MiB (48 MiB on v7x, 96 MiB on v5e/v6e)."""
    try:
        cap = int(pltpu.get_tpu_info().vmem_capacity_bytes)
    except Exception:
        cap = 64 * 1024 * 1024          # conservative v7x floor
    return min((cap * 3) // 4, 96 * 1024 * 1024)


def _pick_c_tile(N, C, HW, itemsize, sublane_step, budget_bytes):
    """Largest channel tile that (a) is a multiple of the dtype's sublane packing,
    (b) divides C, and (c) keeps the (c_tile, HW) tile within the VMEM budget."""
    if C % sublane_step != 0:
        return C                         # irregular C: full-extent block (always legal)
    best = sublane_step
    cand = sublane_step
    while cand <= C:
        if C % cand == 0 and cand * HW * itemsize <= budget_bytes:
            best = cand
        cand += sublane_step
    # Megacore guard (v7x has 2 TensorCores): expose at least 2 parallel steps.
    while (N * (C // best) < 2 and best >= 2 * sublane_step
           and (best // 2) % sublane_step == 0 and C % (best // 2) == 0):
        best //= 2
    return best


def adain(x, s, fc_w, fc_b, eps=1e-5):
    """AdaIN forward.

    x:    (N, C, H, W)  activations (NCHW, PyTorch convention)
    s:    (N, S)        style codes
    fc_w: (2C, S)       torch nn.Linear weight
    fc_b: (2C,)         torch nn.Linear bias
    """
    N, C, H, W = x.shape
    S = s.shape[1]
    HW = H * W
    Saug = S + 1

    x3 = x.reshape(N, C, HW)             # contiguous reshape, no transpose

    # Fold the FC bias into the weight (ones column on the style row), split into
    # gamma/beta halves and cast to f32 once -- tiny, grid-resident operands.
    s_aug = jnp.concatenate(
        [s.astype(jnp.float32), jnp.ones((N, 1), jnp.float32)], axis=-1
    ).reshape(N, 1, Saug)
    w_aug = jnp.concatenate(
        [fc_w.astype(jnp.float32), fc_b.astype(jnp.float32).reshape(2 * C, 1)],
        axis=-1)
    w_gamma = w_aug[:C]                  # (C, Saug)
    w_beta = w_aug[C:]                   # (C, Saug)

    itemsize = jnp.dtype(x.dtype).itemsize
    sublane_step = max(8, 32 // itemsize)           # 8 f32 / 16 bf16 / 32 int8
    vmem_limit = _vmem_limit_bytes()

    # Per-tile budget: double-buffered in + out tiles (4x) plus ~2 f32 copies of
    # the tile for intermediates, after reserving resident weights and slack.
    resident = 2 * C * (-(-Saug // 128) * 128) * 4  # lane-padded f32 weights
    slack = 2 * 1024 * 1024
    factor = 4 + -(-8 // itemsize)                  # f32: 6, bf16: 8, int8: 12
    budget = max(256 * 1024, (vmem_limit - resident - slack) // factor)
    # TODO(synk): add an HW-tiling (accumulate sum/sumsq, second normalize pass)
    # fallback for spatial maps so large that even a (sublane_step, HW) tile
    # exceeds the budget; and a channels-on-lanes layout for HW << 128.

    c_tile = _pick_c_tile(N, C, HW, itemsize, sublane_step, budget)
    grid = (N, C // c_tile)

    out = pl.pallas_call(
        functools.partial(_adain_kernel, eps=eps, c_tile=c_tile),
        out_shape=jax.ShapeDtypeStruct((N, C, HW), x.dtype),
        grid_spec=pltpu.PrefetchScalarGridSpec(
            num_scalar_prefetch=0,
            grid=grid,
            in_specs=[
                pl.BlockSpec((None, c_tile, HW), lambda n, c: (n, c, 0)),  # x (streamed)
                pl.BlockSpec((None, 1, Saug), lambda n, c: (n, 0, 0)),     # style (per-sample)
                pl.BlockSpec((C, Saug), lambda n, c: (0, 0)),              # w_gamma (resident)
                pl.BlockSpec((C, Saug), lambda n, c: (0, 0)),              # w_beta  (resident)
            ],
            out_specs=pl.BlockSpec((None, c_tile, HW), lambda n, c: (n, c, 0)),
        ),
        compiler_params=pltpu.CompilerParams(
            dimension_semantics=("parallel", "parallel"),
            vmem_limit_bytes=vmem_limit,
        ),
    )(x3, s_aug, w_gamma, w_beta)

    return out.reshape(N, C, H, W)


def adain_reference(x, s, fc_w, fc_b, eps=1e-5):
    """Pure-JAX reference mirroring the PyTorch module."""
    C = x.shape[1]
    h = s @ fc_w.T + fc_b
    gamma = h[:, :C][:, :, None, None]
    beta = h[:, C:][:, :, None, None]
    mean = x.mean(axis=(2, 3), keepdims=True)
    var = ((x - mean) ** 2).mean(axis=(2, 3), keepdims=True)
    xn = (x - mean) * jax.lax.rsqrt(var + eps)
    return (1.0 + gamma) * xn + beta


if __name__ == "__main__":
    key = jax.random.PRNGKey(0)
    kx, ks, kw, kb = jax.random.split(key, 4)

    N, C, H, W, S = 2, 64, 16, 16, 8
    x = jax.random.normal(kx, (N, C, H, W), jnp.float32)
    s = jax.random.normal(ks, (N, S), jnp.float32)
    fc_w = 0.05 * jax.random.normal(kw, (2 * C, S), jnp.float32)
    fc_b = 0.01 * jax.random.normal(kb, (2 * C,), jnp.float32)

    out = jax.block_until_ready(adain(x, s, fc_w, fc_b))
    assert out.shape == (N, C, H, W), out.shape
    assert bool(jnp.all(jnp.isfinite(out)))

    ref = adain_reference(x, s, fc_w, fc_b)
    max_err = float(jnp.max(jnp.abs(out - ref)))
    assert bool(jnp.allclose(out, ref, rtol=1e-4, atol=1e-4)), max_err

    print("KERNEL_OK")
</pallas_src>

<mosaic_0001>
module attributes {stable_mosaic.version = 11 : i64} {
  func.func @_adain_kernel(%arg0: i32, %arg1: i32, %arg2: memref<1x64x256xf32, #tpu.memory_space<vmem>>, %arg3: memref<1x1x9xf32, #tpu.memory_space<vmem>>, %arg4: memref<64x9xf32, #tpu.memory_space<vmem>>, %arg5: memref<64x9xf32, #tpu.memory_space<vmem>>, %arg6: memref<1x64x256xf32, #tpu.memory_space<vmem>>) attributes {dimension_semantics = [#tpu.dimension_semantics<parallel>, #tpu.dimension_semantics<parallel>], iteration_bounds = array<i64: 2, 1>, scalar_prefetch = 0 : i64, scratch_operands = 0 : i64, tpu.core_type = #tpu.core_type<tc>, window_params = [{transform_indices = @transform_0, window_bounds = array<i64: 1, 64, 256>}, {transform_indices = @transform_1, window_bounds = array<i64: 1, 1, 9>}, {pipeline_mode = #tpu.pipeline_mode<synchronous>, transform_indices = @transform_2, window_bounds = array<i64: 64, 9>}, {pipeline_mode = #tpu.pipeline_mode<synchronous>, transform_indices = @transform_3, window_bounds = array<i64: 64, 9>}, {transform_indices = @transform_4, window_bounds = array<i64: 1, 64, 256>}]} {
    %c64_i32 = arith.constant 64 : i32
    %0 = arith.muli %arg1, %c64_i32 : i32
    %1 = tpu.assume_multiple %0, 64 : i32
    %c0 = arith.constant 0 : index
    %c0_0 = arith.constant 0 : index
    %c0_1 = arith.constant 0 : index
    %2 = vector.load %arg3[%c0, %c0_0, %c0_1] : memref<1x1x9xf32, #tpu.memory_space<vmem>>, vector<1x1x9xf32>
    %3 = vector.shape_cast %2 : vector<1x1x9xf32> to vector<1x9xf32>
    %4 = arith.index_cast %1 : i32 to index
    %c0_2 = arith.constant 0 : index
    %5 = vector.load %arg4[%4, %c0_2] : memref<64x9xf32, #tpu.memory_space<vmem>>, vector<64x9xf32>
    %6 = vector.broadcast %3 : vector<1x9xf32> to vector<64x9xf32>
    %7 = arith.mulf %5, %6 : vector<64x9xf32>
    %cst = arith.constant dense<0.000000e+00> : vector<64xf32>
    %8 = vector.multi_reduction <add>, %7, %cst [1] : vector<64x9xf32> to vector<64xf32>
    %9 = vector.shape_cast %8 : vector<64xf32> to vector<64x1xf32>
    %10 = arith.index_cast %1 : i32 to index
    %c0_3 = arith.constant 0 : index
    %11 = vector.load %arg5[%10, %c0_3] : memref<64x9xf32, #tpu.memory_space<vmem>>, vector<64x9xf32>
    %12 = vector.broadcast %3 : vector<1x9xf32> to vector<64x9xf32>
    %13 = arith.mulf %11, %12 : vector<64x9xf32>
    %cst_4 = arith.constant dense<0.000000e+00> : vector<64xf32>
    %14 = vector.multi_reduction <add>, %13, %cst_4 [1] : vector<64x9xf32> to vector<64xf32>
    %15 = vector.shape_cast %14 : vector<64xf32> to vector<64x1xf32>
    %c0_5 = arith.constant 0 : index
    %c0_6 = arith.constant 0 : index
    %c0_7 = arith.constant 0 : index
    %16 = vector.load %arg2[%c0_5, %c0_6, %c0_7] : memref<1x64x256xf32, #tpu.memory_space<vmem>>, vector<1x64x256xf32>
    %17 = vector.shape_cast %16 : vector<1x64x256xf32> to vector<64x256xf32>
    %cst_8 = arith.constant dense<0.000000e+00> : vector<64xf32>
    %18 = vector.multi_reduction <add>, %17, %cst_8 [1] : vector<64x256xf32> to vector<64xf32>
    %19 = vector.shape_cast %18 : vector<64xf32> to vector<64x1xf32>
    %cst_9 = arith.constant 2.560000e+02 : f32
    %20 = vector.broadcast %cst_9 : f32 to vector<64x1xf32>
    %21 = arith.divf %19, %20 : vector<64x1xf32>
    %22 = vector.broadcast %21 : vector<64x1xf32> to vector<64x256xf32>
    %23 = arith.subf %17, %22 : vector<64x256xf32>
    %24 = arith.mulf %23, %23 : vector<64x256xf32>
    %cst_10 = arith.constant dense<0.000000e+00> : vector<64xf32>
    %25 = vector.multi_reduction <add>, %24, %cst_10 [1] : vector<64x256xf32> to vector<64xf32>
    %26 = vector.shape_cast %25 : vector<64xf32> to vector<64x1xf32>
    %cst_11 = arith.constant 2.560000e+02 : f32
    %27 = vector.broadcast %cst_11 : f32 to vector<64x1xf32>
    %28 = arith.divf %26, %27 : vector<64x1xf32>
    %cst_12 = arith.constant 9.99999974E-6 : f32
    %29 = vector.broadcast %cst_12 : f32 to vector<64x1xf32>
    %30 = arith.addf %28, %29 : vector<64x1xf32>
    %31 = math.rsqrt %30 : vector<64x1xf32>
    %cst_13 = arith.constant 1.000000e+00 : f32
    %32 = vector.broadcast %cst_13 : f32 to vector<64x1xf32>
    %33 = arith.addf %32, %9 : vector<64x1xf32>
    %34 = vector.broadcast %31 : vector<64x1xf32> to vector<64x256xf32>
    %35 = arith.mulf %23, %34 : vector<64x256xf32>
    %36 = vector.broadcast %33 : vector<64x1xf32> to vector<64x256xf32>
    %37 = arith.mulf %36, %35 : vector<64x256xf32>
    %38 = vector.broadcast %15 : vector<64x1xf32> to vector<64x256xf32>
    %39 = arith.addf %37, %38 : vector<64x256xf32>
    %c0_14 = arith.constant 0 : index
    %c0_15 = arith.constant 0 : index
    %c0_16 = arith.constant 0 : index
    %40 = vector.load %arg6[%c0_14, %c0_15, %c0_16] : memref<1x64x256xf32, #tpu.memory_space<vmem>>, vector<1x64x256xf32>
    %41 = vector.shape_cast %40 : vector<1x64x256xf32> to vector<64x256xf32>
    %42 = vector.shape_cast %39 : vector<64x256xf32> to vector<1x64x256xf32>
    tpu.vector_store %arg6[%c0_14, %c0_15, %c0_16], %42 {strides = array<i32>} : memref<1x64x256xf32, #tpu.memory_space<vmem>>, vector<1x64x256xf32>,
    return
  }
  func.func @transform_0(%arg0: i32, %arg1: i32) -> (i32, i32, i32) {
    %c0_i32 = arith.constant 0 : i32
    %c0_i32_0 = arith.constant 0 : i32
    return %arg0, %arg1, %c0_i32 : i32, i32, i32
  }
  func.func @transform_1(%arg0: i32, %arg1: i32) -> (i32, i32, i32) {
    %c0_i32 = arith.constant 0 : i32
    %c0_i32_0 = arith.constant 0 : i32
    %c0_i32_1 = arith.constant 0 : i32
    return %arg0, %c0_i32, %c0_i32_0 : i32, i32, i32
  }
  func.func @transform_2(%arg0: i32, %arg1: i32) -> (i32, i32) {
    %c0_i32 = arith.constant 0 : i32
    %c0_i32_0 = arith.constant 0 : i32
    %c0_i32_1 = arith.constant 0 : i32
    return %c0_i32, %c0_i32_0 : i32, i32
  }
  func.func @transform_3(%arg0: i32, %arg1: i32) -> (i32, i32) {
    %c0_i32 = arith.constant 0 : i32
    %c0_i32_0 = arith.constant 0 : i32
    %c0_i32_1 = arith.constant 0 : i32
    return %c0_i32, %c0_i32_0 : i32, i32
  }
  func.func @transform_4(%arg0: i32, %arg1: i32) -> (i32, i32, i32) {
    %c0_i32 = arith.constant 0 : i32
    %c0_i32_0 = arith.constant 0 : i32
    return %arg0, %arg1, %c0_i32 : i32, i32, i32
  }
}

</mosaic_0001>

<llo_original>
// kernel: tpu_custom_call.1
$region0: #{tpu_custom_call.1}
  #allocation0 [shape = 'u32[]', space=smem, size = 0x4, offset = 0x4, fixed_abs, tag = 'smem constant byte address 0x4 - core index']
  #allocation1 [shape = 'u32[144,128]{1,0:T(1,128)}', space=vmem, size = 0x12000, scoped, tag = 'internal scratch']
  %s0 = inlined_call_operand.hbm [shape: f32[2,64,256], index: 0, kind: input, shape index: {}]
  %s1 = inlined_call_operand.vmem [shape: f32[2,1,9], index: 1, kind: input, shape index: {}]
  %s2 = inlined_call_operand.vmem [shape: f32[64,9], index: 2, kind: input, shape index: {}]
  %s3 = inlined_call_operand.vmem [shape: f32[64,9], index: 3, kind: input, shape index: {}]
  %s4 = inlined_call_operand.hbm [shape: f32[2,64,256], index: 4, kind: output, shape index: {}]
  %s5 = sld [smem:[#allocation0]]
  $region53: #{tpu_custom_call.1} parent=0
    _
  %s7 = ssub.s32 1, %s5
  %s8 = scalar_select 0, %s7, %s5
  $region1: #{tpu_custom_call.1} parent=0
    #allocation2 [shape = 'u8[131072]{0}', space=vmem, size = 0x20000, scoped, tag = 'input window, operand 0']
    #allocation3 [shape = 's32[2]{0}', space=sflag, size = 0x8, scoped, tag = 'scoped memory for tpu_custom_call.1']
    #allocation4 [shape = 's32[2]{0}', space=sflag, size = 0x8, scoped, tag = 'scoped memory for tpu_custom_call.1']
    #allocation5 [shape = 'u8[131072]{0}', space=vmem, size = 0x20000, scoped, tag = 'output window, operand 0']
    %9 = vsyncpa [#allocation3], 0
    %s10 = scalar_lea.sflag [#allocation3], 1
    %11 = vsyncpa %s10, 0
    %12 = vsyncpa [#allocation4], 0
    %s13 = scalar_lea.sflag [#allocation4], 1
    %14 = vsyncpa %s13, 0
    loop: start=0, step=1, limit=4
    $region2: #{tpu_custom_call.1} parent=1 // loop_pre_header
      _
    $region3: #{tpu_custom_call.1} parent=1 // loop_header
      %s16 = sphi 0, %s20
      %p17 = scmp.ge.s32.totalorder %s16, 4
      %s23 = sphi 0, %s35
      %s24 = sphi 0, %s31
      %s25 = sphi 0, %s23
      %s26 = sphi 0, %s24
      %s27 = sphi 0, %s25
      %s28 = sphi 0, %s26
      %s40 = sphi 0, %s42
      %s43 = sphi 0, %s40
      %s44 = sphi 0, %s43
      %s60 = sphi 0, %s44
      %s66 = sphi 0, %s68
      %s69 = sphi 0, %s66
      %s70 = sphi 0, %s69
      %s86 = sphi 0, %s70
      %s90 = sphi 0, %s90
      %s92 = sphi 0, %s90
      %s93 = sphi 0, %s92
      %s107 = sphi 0, %s93
      %s111 = sphi 0, %s111
      %s113 = sphi 0, %s111
      %s114 = sphi 0, %s113
      %s128 = sphi 0, %s114
      %s136 = sphi 0, %s138
      %s139 = sphi 0, %s136
      %s140 = sphi 0, %s139
      %s156 = sphi 0, %s140
    $region4: #{tpu_custom_call.1} parent=1 // loop_header_branch
      %19 = sbr.rel (%p17) target = $region8
    $region5: #{tpu_custom_call.1} parent=1 // loop_body
      %s21 = ssub.s32 %s16, 1
      %s22 = ssub.s32 %s16, 2
      %s29 = sadd.s32 1, %s24
      %p30 = scmp.ge.s32.totalorder %s29, 1
      %s31 = scalar_select %p30, 0, %s29
      %s32 = sadd.s32 1, %s23
      %s33 = scalar_select %p30, %s32, %s23
      %p34 = scmp.ge.s32.totalorder %s33, 2
      %s35 = scalar_select %p34, 0, %s33
      %s36 = ssub.s32 %s23, %s35
      %s37 = ssub.s32 %s24, %s31
      %s38 = sor.u32 %s36, %s37
      %p39 = scmp.eq.s32.totalorder %s38, 0
      %s41 = sadd.s32 %s40, 1
      %s42 = scalar_select %p39, %s40, %s41
      %p45 = pneg %p39
      %p46 = scmp.eq.s32.totalorder %s16, 1
      %p47 = por %p45, %p46
      %p48 = scmp.ne.s32.totalorder %s40, %s43
      %p49 = scmp.eq.s32.totalorder %s16, 0
      %p50 = por %p48, %p49
      %p51 = scmp.ne.s32.totalorder %s40, %s43
      %p52 = scmp.eq.s32.totalorder %s21, 1
      %p53 = por %p51, %p52
      %p54 = scmp.ne.s32.totalorder %s43, %s44
      %p55 = scmp.eq.s32.totalorder %s21, 0
      %p56 = por %p54, %p55
      %p57 = scmp.ne.s32.totalorder %s43, %s44
      %p58 = scmp.eq.s32.totalorder %s22, 1
      %p59 = por %p57, %p58
      %p61 = scmp.ne.s32.totalorder %s44, %s60
      %p62 = scmp.eq.s32.totalorder %s22, 0
      %p63 = por %p61, %p62
      %s64 = ssub.s32 %s23, %s35
      %p65 = scmp.eq.s32.totalorder %s64, 0
      %s67 = sadd.s32 %s66, 1
      %s68 = scalar_select %p65, %s66, %s67
      %p71 = pneg %p65
      %p72 = scmp.eq.s32.totalorder %s16, 1
      %p73 = por %p71, %p72
      %p74 = scmp.ne.s32.totalorder %s66, %s69
      %p75 = scmp.eq.s32.totalorder %s16, 0
      %p76 = por %p74, %p75
      %p77 = scmp.ne.s32.totalorder %s66, %s69
      %p78 = scmp.eq.s32.totalorder %s21, 1
      %p79 = por %p77, %p78
      %p80 = scmp.ne.s32.totalorder %s69, %s70
      %p81 = scmp.eq.s32.totalorder %s21, 0
      %p82 = por %p80, %p81
      %p83 = scmp.ne.s32.totalorder %s69, %s70
      %p84 = scmp.eq.s32.totalorder %s22, 1
      %p85 = por %p83, %p84
      %p87 = scmp.ne.s32.totalorder %s70, %s86
      %p88 = scmp.eq.s32.totalorder %s22, 0
      %p89 = por %p87, %p88
      %s91 = sadd.s32 %s90, 1
      %p94 = scmp.eq.s32.totalorder %s16, 1
      %p95 = scmp.ne.s32.totalorder %s90, %s92
      %p96 = scmp.eq.s32.totalorder %s16, 0
      %p97 = por %p95, %p96
      %p98 = scmp.ne.s32.totalorder %s90, %s92
      %p99 = scmp.eq.s32.totalorder %s21, 1
      %p100 = por %p98, %p99
      %p101 = scmp.ne.s32.totalorder %s92, %s93
      %p102 = scmp.eq.s32.totalorder %s21, 0
      %p103 = por %p101, %p102
      %p104 = scmp.ne.s32.totalorder %s92, %s93
      %p105 = scmp.eq.s32.totalorder %s22, 1
      %p106 = por %p104, %p105
      %p108 = scmp.ne.s32.totalorder %s93, %s107
      %p109 = scmp.eq.s32.totalorder %s22, 0
      %p110 = por %p108, %p109
      %s112 = sadd.s32 %s111, 1
      %p115 = scmp.eq.s32.totalorder %s16, 1
      %p116 = scmp.ne.s32.totalorder %s111, %s113
      %p117 = scmp.eq.s32.totalorder %s16, 0
      %p118 = por %p116, %p117
      %p119 = scmp.ne.s32.totalorder %s111, %s113
      %p120 = scmp.eq.s32.totalorder %s21, 1
      %p121 = por %p119, %p120
      %p122 = scmp.ne.s32.totalorder %s113, %s114
      %p123 = scmp.eq.s32.totalorder %s21, 0
      %p124 = por %p122, %p123
      %p125 = scmp.ne.s32.totalorder %s113, %s114
      %p126 = scmp.eq.s32.totalorder %s22, 1
      %p127 = por %p125, %p126
      %p129 = scmp.ne.s32.totalorder %s114, %s128
      %p130 = scmp.eq.s32.totalorder %s22, 0
      %p131 = por %p129, %p130
      %s132 = ssub.s32 %s23, %s35
      %s133 = ssub.s32 %s24, %s31
      %s134 = sor.u32 %s132, %s133
      %p135 = scmp.eq.s32.totalorder %s134, 0
      %s137 = sadd.s32 %s136, 1
      %s138 = scalar_select %p135, %s136, %s137
      %p141 = pneg %p135
      %p142 = scmp.eq.s32.totalorder %s16, 1
      %p143 = por %p141, %p142
      %p144 = scmp.ne.s32.totalorder %s136, %s139
      %p145 = scmp.eq.s32.totalorder %s16, 0
      %p146 = por %p144, %p145
      %p147 = scmp.ne.s32.totalorder %s136, %s139
      %p148 = scmp.eq.s32.totalorder %s21, 1
      %p149 = por %p147, %p148
      %p150 = scmp.ne.s32.totalorder %s139, %s140
      %p151 = scmp.eq.s32.totalorder %s21, 0
      %p152 = por %p150, %p151
      %p153 = scmp.ne.s32.totalorder %s139, %s140
      %p154 = scmp.eq.s32.totalorder %s22, 1
      %p155 = por %p153, %p154
      %p157 = scmp.ne.s32.totalorder %s140, %s156
      %p158 = scmp.eq.s32.totalorder %s22, 0
      %p159 = por %p157, %p158
      %p160 = scmp.le.s32.totalorder 1, %s16
      %p161 = scmp.lt.s32.totalorder %s16, 3
      %p162 = pnand %p160, %p161
      %p163 = pneg %p162
      // Predicated region
      $region9: #{tpu_custom_call.1} parent=5 // pred_check
        _
      $region10: #{tpu_custom_call.1} parent=5 // pred_check_branch
        %165 = sbr.rel (%p162) target = $region12
      $region11: #{tpu_custom_call.1} parent=5 // pred_region
        %s166 = ssub.s32 %s16, 1
        // Predicated region
        $region13: #{tpu_custom_call.1} parent=11 // pred_check
          %p167 = pneg %p103
        $region14: #{tpu_custom_call.1} parent=11 // pred_check_branch
          %169 = sbr.rel (%p167) target = $region16
        $region15: #{tpu_custom_call.1} parent=11 // pred_region
          _
        $region16: #{tpu_custom_call.1} parent=11 // pred_fallthru
          _
        // Predicated region
        $region17: #{tpu_custom_call.1} parent=11 // pred_check
          %p170 = pneg %p124
        $region18: #{tpu_custom_call.1} parent=11 // pred_check_branch
          %172 = sbr.rel (%p170) target = $region20
        $region19: #{tpu_custom_call.1} parent=11 // pred_region
          _
        $region20: #{tpu_custom_call.1} parent=11 // pred_fallthru
          _
      $region12: #{tpu_custom_call.1} parent=5 // pred_fallthru
        _
      %p173 = scmp.lt.s32.totalorder %s16, 2
      // Predicated region
      $region21: #{tpu_custom_call.1} parent=5 // pred_check
        %p174 = pneg %p173
      $region22: #{tpu_custom_call.1} parent=5 // pred_check_branch
        %176 = sbr.rel (%p174) target = $region24
      $region23: #{tpu_custom_call.1} parent=5 // pred_region
        // Predicated region
        $region25: #{tpu_custom_call.1} parent=23 // pred_check
          %p177 = pneg %p50
        $region26: #{tpu_custom_call.1} parent=23 // pred_check_branch
          %179 = sbr.rel (%p177) target = $region28
        $region27: #{tpu_custom_call.1} parent=23 // pred_region
          %s180 = sand.u32 %s40, 1
          %s181 = scalar_lea.sflag [#allocation3], %s180
          %s182 = sand.u32 %s40, 1
          %s183 = smul.addr %s182, 128
          %s184 = scalar_lea.vmem [#allocation2], %s183
          %s185 = smul.u32 8, %s24
          %s187 = ssub.s32 2048, 2048
          %188 = vsyncadd %s181, %s187
          %s189 = smul.addr %s185, 2
          %s190 = smul.addr %s23, 16
          %s191 = sadd.s32 %s189, %s190
          %s192 = smul.addr %s191, 128
          %s193 = scalar_lea.hbm %s0, %s192
          %s194 = sshll.u32 %s184, 4
          %s195 = int_to_ptr.vmem [resolvable:$true] %s194
          %200 = dma.hbm_to_vmem [thread:$0]  %s193, 2048, %s195, %s181, 256, 256, 16
        $region28: #{tpu_custom_call.1} parent=23 // pred_fallthru
          _
        // Predicated region
        $region29: #{tpu_custom_call.1} parent=23 // pred_check
          %p201 = pneg %p76
        $region30: #{tpu_custom_call.1} parent=23 // pred_check_branch
          %203 = sbr.rel (%p201) target = $region32
        $region31: #{tpu_custom_call.1} parent=23 // pred_region
          %p204 = scmp.lt.s32.totalorder %s23, 1
          %s205 = scalar_select %p204, %s23, 1
          %s206 = scalar_lea.vmem %s1, %s205
        $region32: #{tpu_custom_call.1} parent=23 // pred_fallthru
          _
      $region24: #{tpu_custom_call.1} parent=5 // pred_fallthru
        _
      %p207 = scmp.le.s32.totalorder 1, %s16
      %p208 = scmp.lt.s32.totalorder %s16, 3
      %p209 = pnand %p207, %p208
      %p210 = pneg %p209
      // Predicated region
      $region33: #{tpu_custom_call.1} parent=5 // pred_check
        _
      $region34: #{tpu_custom_call.1} parent=5 // pred_check_branch
        %212 = sbr.rel (%p209) target = $region36
      $region35: #{tpu_custom_call.1} parent=5 // pred_region
        %s213 = ssub.s32 %s16, 1
        %s214 = sand.u32 %s43, 1
        %s215 = scalar_lea.sflag [#allocation3], %s214
        %s216 = sand.u32 %s43, 1
        %s217 = smul.addr %s216, 128
        %s218 = scalar_lea.vmem [#allocation2], %s217
        // Predicated region
        $region37: #{tpu_custom_call.1} parent=35 // pred_check
          %p219 = pneg %p56
        $region38: #{tpu_custom_call.1} parent=35 // pred_check_branch
          %221 = sbr.rel (%p219) target = $region40
        $region39: #{tpu_custom_call.1} parent=35 // pred_region
          %222 = dma.done %s215, 2048
        $region40: #{tpu_custom_call.1} parent=35 // pred_fallthru
          _
        %s223 = sand.u32 %s43, 1
        %s224 = scalar_lea.sflag [#allocation3], %s223
        %s225 = sand.u32 %s43, 1
        %s226 = smul.addr %s225, 128
        %s227 = scalar_lea.vmem [#allocation2], %s226
        %p228 = pneg %p56
        %p229 = pneg %p53
        %p230 = scmp.lt.s32.totalorder %s25, 1
        %s231 = scalar_select %p230, %s25, 1
        %s232 = scalar_lea.vmem %s1, %s231
        %p233 = pneg %p82
        %p234 = pneg %p79
        %p235 = pneg %p103
        %p236 = pneg %p100
        %p237 = pneg %p124
        %p238 = pneg %p121
        %p239 = pneg %p152
        %p240 = pneg %p149
        %s241 = sand.u32 %s139, 1
        %s242 = scalar_lea.sflag [#allocation4], %s241
        %s243 = sand.u32 %s139, 1
        %s244 = smul.addr %s243, 128
        %s245 = scalar_lea.vmem [#allocation5], %s244
        %s246 = smul.u32 8, %s26
        %p247 = scmp.lt.s32.totalorder %s25, 1
        %s248 = scalar_select %p247, %s25, 1
        %s249 = scalar_lea.vmem %s1, %s248
        %s250 = smul.u32 8, %s26
        %s251 = smul.u32 %s26, 64
        %v252 = vld [vmem:[%s249] sm:$0x1]
        %s253 = scalar_lea.vmem %s2, %s251
        %v254 = vld [vmem:[%s253] sm:$0xff]
        %v255 = vld [vmem:[%s253 + $0x8] sm:$0xff]
        %v256 = vld [vmem:[%s253 + $0x10] sm:$0xff]
        %v257 = vld [vmem:[%s253 + $0x18] sm:$0xff]
        %v258 = vld [vmem:[%s253 + $0x20] sm:$0xff]
        %v259 = vld [vmem:[%s253 + $0x28] sm:$0xff]
        %v260 = vld [vmem:[%s253 + $0x30] sm:$0xff]
        %v261 = vld [vmem:[%s253 + $0x38] sm:$0xff]
        %v263 = vlaneseq
        %v264 = vshrl.u32 %v263, 7
        %v265 = vsub.s32 0, %v264
        %v266 = vrot.slane %v252, %v265
        %v268 = vmul.f32 %v254, %v266
        %v269 = vmul.f32 %v255, %v266
        %v270 = vmul.f32 %v256, %v266
        %v271 = vmul.f32 %v257, %v266
        %v272 = vmul.f32 %v258, %v266
        %v273 = vmul.f32 %v259, %v266
        %v274 = vmul.f32 %v260, %v266
        %v275 = vmul.f32 %v261, %v266
        %vm276 = vcmask 72704
        %v277 = vsel %vm276, %v268, 0.0
        %278 = vadd.xlane.f32.xlu0 %v277
        %v279 = vpop.xlane.xlu0 %278
        %v280 = vsel %vm276, %v269, 0.0
        %281 = vadd.xlane.f32.xlu0 %v280
        %v282 = vpop.xlane.xlu0 %281
        %v283 = vsel %vm276, %v270, 0.0
        %284 = vadd.xlane.f32.xlu0 %v283
        %v285 = vpop.xlane.xlu0 %284
        %v286 = vsel %vm276, %v271, 0.0
        %287 = vadd.xlane.f32.xlu0 %v286
        %v288 = vpop.xlane.xlu0 %287
        %v289 = vsel %vm276, %v272, 0.0
        %290 = vadd.xlane.f32.xlu0 %v289
        %v291 = vpop.xlane.xlu0 %290
        %v292 = vsel %vm276, %v273, 0.0
        %293 = vadd.xlane.f32.xlu0 %v292
        %v294 = vpop.xlane.xlu0 %293
        %v295 = vsel %vm276, %v274, 0.0
        %296 = vadd.xlane.f32.xlu0 %v295
        %v297 = vpop.xlane.xlu0 %296
        %v298 = vsel %vm276, %v275, 0.0
        %299 = vadd.xlane.f32.xlu0 %v298
        %v300 = vpop.xlane.xlu0 %299
        %s301 = scalar_lea.vmem %s3, %s251
        %v302 = vld [vmem:[%s301] sm:$0xff]
        %v303 = vld [vmem:[%s301 + $0x8] sm:$0xff]
        %v304 = vld [vmem:[%s301 + $0x10] sm:$0xff]
        %v305 = vld [vmem:[%s301 + $0x18] sm:$0xff]
        %v306 = vld [vmem:[%s301 + $0x20] sm:$0xff]
        %v307 = vld [vmem:[%s301 + $0x28] sm:$0xff]
        %v308 = vld [vmem:[%s301 + $0x30] sm:$0xff]
        %v309 = vld [vmem:[%s301 + $0x38] sm:$0xff]
        %v310 = vmul.f32 %v302, %v266
        %v311 = vmul.f32 %v303, %v266
        %v312 = vmul.f32 %v304, %v266
        %v313 = vmul.f32 %v305, %v266
        %v314 = vmul.f32 %v306, %v266
        %v315 = vmul.f32 %v307, %v266
        %v316 = vmul.f32 %v308, %v266
        %v317 = vmul.f32 %v309, %v266
        %v318 = vsel %vm276, %v310, 0.0
        %319 = vadd.xlane.f32.xlu0 %v318
        %v320 = vpop.xlane.xlu0 %319
        %v321 = vsel %vm276, %v311, 0.0
        %322 = vadd.xlane.f32.xlu0 %v321
        %v323 = vpop.xlane.xlu0 %322
        %v324 = vsel %vm276, %v312, 0.0
        %325 = vadd.xlane.f32.xlu0 %v324
        %v326 = vpop.xlane.xlu0 %325
        %v327 = vsel %vm276, %v313, 0.0
        %328 = vadd.xlane.f32.xlu0 %v327
        %v329 = vpop.xlane.xlu0 %328
        %v330 = vsel %vm276, %v314, 0.0
        %331 = vadd.xlane.f32.xlu0 %v330
        %v332 = vpop.xlane.xlu0 %331
        %v333 = vsel %vm276, %v315, 0.0
        %334 = vadd.xlane.f32.xlu0 %v333
        %v335 = vpop.xlane.xlu0 %334
        %v336 = vsel %vm276, %v316, 0.0
        %337 = vadd.xlane.f32.xlu0 %v336
        %v338 = vpop.xlane.xlu0 %337
        %v339 = vsel %vm276, %v317, 0.0
        %340 = vadd.xlane.f32.xlu0 %v339
        %v341 = vpop.xlane.xlu0 %340
        %v342 = vld [vmem:[%s218] sm:$0xff]
        %v343 = vld [vmem:[%s218 + $0x8] sm:$0xff]
        %v344 = vld [vmem:[%s218 + $0x10] sm:$0xff]
        %v345 = vld [vmem:[%s218 + $0x18] sm:$0xff]
        %v346 = vld [vmem:[%s218 + $0x20] sm:$0xff]
        %v347 = vld [vmem:[%s218 + $0x28] sm:$0xff]
        %v348 = vld [vmem:[%s218 + $0x30] sm:$0xff]
        %v349 = vld [vmem:[%s218 + $0x38] sm:$0xff]
        %v350 = vld [vmem:[%s218 + $0x40] sm:$0xff]
        %v351 = vld [vmem:[%s218 + $0x48] sm:$0xff]
        %v352 = vld [vmem:[%s218 + $0x50] sm:$0xff]
        %v353 = vld [vmem:[%s218 + $0x58] sm:$0xff]
        %v354 = vld [vmem:[%s218 + $0x60] sm:$0xff]
        %v355 = vld [vmem:[%s218 + $0x68] sm:$0xff]
        %v356 = vld [vmem:[%s218 + $0x70] sm:$0xff]
        %v357 = vld [vmem:[%s218 + $0x78] sm:$0xff]
        %v358 = vadd.f32 %v342, %v343
        %359 = vadd.xlane.f32.xlu0 %v358
        %v360 = vpop.xlane.xlu0 %359
        %v361 = vadd.f32 %v344, %v345
        %362 = vadd.xlane.f32.xlu0 %v361
        %v363 = vpop.xlane.xlu0 %362
        %v364 = vadd.f32 %v346, %v347
        %365 = vadd.xlane.f32.xlu0 %v364
        %v366 = vpop.xlane.xlu0 %365
        %v367 = vadd.f32 %v348, %v349
        %368 = vadd.xlane.f32.xlu0 %v367
        %v369 = vpop.xlane.xlu0 %368
        %v370 = vadd.f32 %v350, %v351
        %371 = vadd.xlane.f32.xlu0 %v370
        %v372 = vpop.xlane.xlu0 %371
        %v373 = vadd.f32 %v352, %v353
        %374 = vadd.xlane.f32.xlu0 %v373
        %v375 = vpop.xlane.xlu0 %374
        %v376 = vadd.f32 %v354, %v355
        %377 = vadd.xlane.f32.xlu0 %v376
        %v378 = vpop.xlane.xlu0 %377
        %v379 = vadd.f32 %v356, %v357
        %380 = vadd.xlane.f32.xlu0 %v379
        %v381 = vpop.xlane.xlu0 %380
        %v382 = vrcp.pop 256.0
        %v383 = vmul.f32 %v360, %v382
        %v384 = vmul.f32 %v363, %v382
        %v385 = vmul.f32 %v366, %v382
        %v386 = vmul.f32 %v369, %v382
        %v387 = vmul.f32 %v372, %v382
        %v388 = vmul.f32 %v375, %v382
        %v389 = vmul.f32 %v378, %v382
        %v390 = vmul.f32 %v381, %v382
        %v391 = vsub.f32 %v342, %v383
        %v392 = vsub.f32 %v343, %v383
        %v393 = vsub.f32 %v344, %v384
        %v394 = vsub.f32 %v345, %v384
        %v395 = vsub.f32 %v346, %v385
        %v396 = vsub.f32 %v347, %v385
        %v397 = vsub.f32 %v348, %v386
        %v398 = vsub.f32 %v349, %v386
        %v399 = vsub.f32 %v350, %v387
        %v400 = vsub.f32 %v351, %v387
        %v401 = vsub.f32 %v352, %v388
        %v402 = vsub.f32 %v353, %v388
        %v403 = vsub.f32 %v354, %v389
        %v404 = vsub.f32 %v355, %v389
        %v405 = vsub.f32 %v356, %v390
        %v406 = vsub.f32 %v357, %v390
        %v407 = vmul.f32 %v391, %v391
        %v408 = vmul.f32 %v392, %v392
        %v409 = vmul.f32 %v393, %v393
        %v410 = vmul.f32 %v394, %v394
        %v411 = vmul.f32 %v395, %v395
        %v412 = vmul.f32 %v396, %v396
        %v413 = vmul.f32 %v397, %v397
        %v414 = vmul.f32 %v398, %v398
        %v415 = vmul.f32 %v399, %v399
        %v416 = vmul.f32 %v400, %v400
        %v417 = vmul.f32 %v401, %v401
        %v418 = vmul.f32 %v402, %v402
        %v419 = vmul.f32 %v403, %v403
        %v420 = vmul.f32 %v404, %v404
        %v421 = vmul.f32 %v405, %v405
        %v422 = vmul.f32 %v406, %v406
        %v423 = vadd.f32 %v407, %v408
        %424 = vadd.xlane.f32.xlu0 %v423
        %v425 = vpop.xlane.xlu0 %424
        %v426 = vadd.f32 %v409, %v410
        %427 = vadd.xlane.f32.xlu0 %v426
        %v428 = vpop.xlane.xlu0 %427
        %v429 = vadd.f32 %v411, %v412
        %430 = vadd.xlane.f32.xlu0 %v429
        %v431 = vpop.xlane.xlu0 %430
        %v432 = vadd.f32 %v413, %v414
        %433 = vadd.xlane.f32.xlu0 %v432
        %v434 = vpop.xlane.xlu0 %433
        %v435 = vadd.f32 %v415, %v416
        %436 = vadd.xlane.f32.xlu0 %v435
        %v437 = vpop.xlane.xlu0 %436
        %v438 = vadd.f32 %v417, %v418
        %439 = vadd.xlane.f32.xlu0 %v438
        %v440 = vpop.xlane.xlu0 %439
        %v441 = vadd.f32 %v419, %v420
        %442 = vadd.xlane.f32.xlu0 %v441
        %v443 = vpop.xlane.xlu0 %442
        %v444 = vadd.f32 %v421, %v422
        %445 = vadd.xlane.f32.xlu0 %v444
        %v446 = vpop.xlane.xlu0 %445
        %v447 = vmul.f32 %v425, %v382
        %v448 = vmul.f32 %v428, %v382
        %v449 = vmul.f32 %v431, %v382
        %v450 = vmul.f32 %v434, %v382
        %v451 = vmul.f32 %v437, %v382
        %v452 = vmul.f32 %v440, %v382
        %v453 = vmul.f32 %v443, %v382
        %v454 = vmul.f32 %v446, %v382
        %v455 = vadd.f32 %v447, 1e-05
        %v456 = vadd.f32 %v448, 1e-05
        %v457 = vadd.f32 %v449, 1e-05
        %v458 = vadd.f32 %v450, 1e-05
        %v459 = vadd.f32 %v451, 1e-05
        %v460 = vadd.f32 %v452, 1e-05
        %v461 = vadd.f32 %v453, 1e-05
        %v462 = vadd.f32 %v454, 1e-05
        %v463 = vrsqrt.pop %v455
        %v464 = vrsqrt.pop %v456
        %v465 = vrsqrt.pop %v457
        %v466 = vrsqrt.pop %v458
        %v467 = vrsqrt.pop %v459
        %v468 = vrsqrt.pop %v460
        %v469 = vrsqrt.pop %v461
        %v470 = vrsqrt.pop %v462
        %v471 = vadd.f32 %v279, 1.0
        %v472 = vadd.f32 %v282, 1.0
        %v473 = vadd.f32 %v285, 1.0
        %v474 = vadd.f32 %v288, 1.0
        %v475 = vadd.f32 %v291, 1.0
        %v476 = vadd.f32 %v294, 1.0
        %v477 = vadd.f32 %v297, 1.0
        %v478 = vadd.f32 %v300, 1.0
        %v479 = vmul.f32 %v391, %v463
        %v480 = vmul.f32 %v392, %v463
        %v481 = vmul.f32 %v393, %v464
        %v482 = vmul.f32 %v394, %v464
        %v483 = vmul.f32 %v395, %v465
        %v484 = vmul.f32 %v396, %v465
        %v485 = vmul.f32 %v397, %v466
        %v486 = vmul.f32 %v398, %v466
        %v487 = vmul.f32 %v399, %v467
        %v488 = vmul.f32 %v400, %v467
        %v489 = vmul.f32 %v401, %v468
        %v490 = vmul.f32 %v402, %v468
        %v491 = vmul.f32 %v403, %v469
        %v492 = vmul.f32 %v404, %v469
        %v493 = vmul.f32 %v405, %v470
        %v494 = vmul.f32 %v406, %v470
        %v495 = vmul.f32 %v471, %v479
        %v496 = vmul.f32 %v471, %v480
        %v497 = vmul.f32 %v472, %v481
        %v498 = vmul.f32 %v472, %v482
        %v499 = vmul.f32 %v473, %v483
        %v500 = vmul.f32 %v473, %v484
        %v501 = vmul.f32 %v474, %v485
        %v502 = vmul.f32 %v474, %v486
        %v503 = vmul.f32 %v475, %v487
        %v504 = vmul.f32 %v475, %v488
        %v505 = vmul.f32 %v476, %v489
        %v506 = vmul.f32 %v476, %v490
        %v507 = vmul.f32 %v477, %v491
        %v508 = vmul.f32 %v477, %v492
        %v509 = vmul.f32 %v478, %v493
        %v510 = vmul.f32 %v478, %v494
        %v511 = vadd.f32 %v495, %v320
        %v512 = vadd.f32 %v496, %v320
        %v513 = vadd.f32 %v497, %v323
        %v514 = vadd.f32 %v498, %v323
        %v515 = vadd.f32 %v499, %v326
        %v516 = vadd.f32 %v500, %v326
        %v517 = vadd.f32 %v501, %v329
        %v518 = vadd.f32 %v502, %v329
        %v519 = vadd.f32 %v503, %v332
        %v520 = vadd.f32 %v504, %v332
        %v521 = vadd.f32 %v505, %v335
        %v522 = vadd.f32 %v506, %v335
        %v523 = vadd.f32 %v507, %v338
        %v524 = vadd.f32 %v508, %v338
        %v525 = vadd.f32 %v509, %v341
        %v526 = vadd.f32 %v510, %v341
        %527 = vst [vmem:[%s245] sm:$0xff] %v511
        %528 = vst [vmem:[%s245 + $0x8] sm:$0xff] %v512
        %529 = vst [vmem:[%s245 + $0x10] sm:$0xff] %v513
        %530 = vst [vmem:[%s245 + $0x18] sm:$0xff] %v514
        %531 = vst [vmem:[%s245 + $0x20] sm:$0xff] %v515
        %532 = vst [vmem:[%s245 + $0x28] sm:$0xff] %v516
        %533 = vst [vmem:[%s245 + $0x30] sm:$0xff] %v517
        %534 = vst [vmem:[%s245 + $0x38] sm:$0xff] %v518
        %535 = vst [vmem:[%s245 + $0x40] sm:$0xff] %v519
        %536 = vst [vmem:[%s245 + $0x48] sm:$0xff] %v520
        %537 = vst [vmem:[%s245 + $0x50] sm:$0xff] %v521
        %538 = vst [vmem:[%s245 + $0x58] sm:$0xff] %v522
        %539 = vst [vmem:[%s245 + $0x60] sm:$0xff] %v523
        %540 = vst [vmem:[%s245 + $0x68] sm:$0xff] %v524
        %541 = vst [vmem:[%s245 + $0x70] sm:$0xff] %v525
        %542 = vst [vmem:[%s245 + $0x78] sm:$0xff] %v526
        %s543 = sand.u32 %s139, 1
        %s544 = scalar_lea.sflag [#allocation4], %s543
        %s545 = sand.u32 %s139, 1
        %s546 = smul.addr %s545, 128
        %s547 = scalar_lea.vmem [#allocation5], %s546
        // Predicated region
        $region41: #{tpu_custom_call.1} parent=35 // pred_check
          %p548 = pneg %p149
        $region42: #{tpu_custom_call.1} parent=35 // pred_check_branch
          %550 = sbr.rel (%p548) target = $region44
        $region43: #{tpu_custom_call.1} parent=35 // pred_region
          %s551 = smul.u32 8, %s26
          %s553 = ssub.s32 2048, 2048
          %554 = vsyncadd %s544, %s553
          %s555 = smul.addr %s551, 2
          %s556 = smul.addr %s25, 16
          %s557 = sadd.s32 %s555, %s556
          %s558 = smul.addr %s557, 128
          %s559 = scalar_lea.hbm %s4, %s558
          %s560 = sshll.u32 %s547, 4
          %s561 = int_to_ptr.vmem [resolvable:$true] %s560
          %566 = dma.vmem_to_hbm [thread:$0]  %s561, 2048, %s559, %s544, 256, 256, 16
        $region44: #{tpu_custom_call.1} parent=35 // pred_fallthru
          _
      $region36: #{tpu_custom_call.1} parent=5 // pred_fallthru
        _
      %p567 = scmp.le.s32.totalorder 2, %s16
      // Predicated region
      $region45: #{tpu_custom_call.1} parent=5 // pred_check
        %p568 = pneg %p567
      $region46: #{tpu_custom_call.1} parent=5 // pred_check_branch
        %570 = sbr.rel (%p568) target = $region48
      $region47: #{tpu_custom_call.1} parent=5 // pred_region
        %s571 = ssub.s32 %s16, 2
        // Predicated region
        $region49: #{tpu_custom_call.1} parent=47 // pred_check
          %p572 = pneg %p155
        $region50: #{tpu_custom_call.1} parent=47 // pred_check_branch
          %574 = sbr.rel (%p572) target = $region52
        $region51: #{tpu_custom_call.1} parent=47 // pred_region
          %s575 = sand.u32 %s140, 1
          %s576 = scalar_lea.sflag [#allocation4], %s575
          %s577 = sand.u32 %s140, 1
          %s578 = smul.addr %s577, 128
          %s579 = scalar_lea.vmem [#allocation5], %s578
          %580 = dma.done %s576, 2048
        $region52: #{tpu_custom_call.1} parent=47 // pred_fallthru
          _
      $region48: #{tpu_custom_call.1} parent=5 // pred_fallthru
        _
    $region6: #{tpu_custom_call.1} parent=1 // loop_footer
      %s20 = sadd.s32 1, %s16
    $region7: #{tpu_custom_call.1} parent=1 // loop_footer_branch
      %15 = sbr.rel target = $region3
    $region8: #{tpu_custom_call.1} parent=1 // loop_exit
      _
    %581 = vsyncpa [#allocation3], 1
    %s582 = scalar_lea.sflag [#allocation3], 1
    %583 = vsyncpa %s582, 1
    %584 = vsyncpa [#allocation4], 1
    %s585 = scalar_lea.sflag [#allocation4], 1
    %586 = vsyncpa %s585, 1

</llo_original>
